<compile_context>
chip_gen: v7x
topology: tpu7x:2x2x1
jax: 0.10.0
libtpu: 0.0.40
codegen_flags: <defaults>
</compile_context>

<pallas_src>
import jax
import jax.numpy as jnp
from jax.experimental import pallas as pl
from jax.experimental.pallas import tpu as pltpu

H = 768      # BERT hidden size  (Conv1d in_channels)
F = 256      # num_filters       (Conv1d out_channels)
K = 3        # Conv1d kernel_size (padding=1)
C = 6        # num_classes
C_PAD = 128  # lane-padded FC output width (multiple of 128)
TB = 128     # batch tile (multiple of 8; small enough to engage both v7x TCs)


def prepare_params(conv_w, conv_b, fc_w, fc_b, *, weight_dtype=jnp.bfloat16):
    """One-time (model-init) re-layout of the PyTorch parameters."""
    wc = conv_w[:, :, K // 2].T.astype(weight_dtype)                 # (H, F) centre tap
    bc = conv_b.reshape(1, F).astype(jnp.float32)                    # (1, F)
    wf = (jnp.zeros((F, C_PAD), jnp.float32).at[:, :C].set(fc_w.T)
          .astype(weight_dtype))                                     # (F, 128) bf16
    bf = jnp.zeros((1, C_PAD), jnp.float32).at[:, :C].set(fc_b)      # (1, 128) f32
    return wc, bc, wf, bf


def _emotion_head_kernel(cls_ref, wc_ref, bc_ref, wf_ref, bf_ref, out_ref):
    # CLS rows of this batch tile; cast to bf16 so both GEMMs run natively on
    # the MXU (f32 accumulation preserves accuracy).
    x = cls_ref[...].astype(wc_ref.dtype)                            # (tb, H)
    # Conv1d(768->256, k=3, pad=1) on a length-1 sequence == centre-tap GEMM.
    conv = jnp.dot(x, wc_ref[...], preferred_element_type=jnp.float32)
    conv = jnp.maximum(conv + bc_ref[...], 0.0)                      # ReLU, (tb, F)
    # torch.max over the length-1 spatial dim is the identity -> straight FC.
    logits = jnp.dot(conv.astype(wf_ref.dtype), wf_ref[...],
                     preferred_element_type=jnp.float32) + bf_ref[...]
    out_ref[...] = logits.astype(out_ref.dtype)                      # (tb, 128)


@jax.jit
def emotion_classifier_head(last_hidden_state, wc, bc, wf, bf):
    """last_hidden_state: (B, S, H) f32 -> logits (B, C) f32."""
    B, S, h = last_hidden_state.shape
    assert h == H

    # CLS-only activations: a tiny XLA slice, so the kernel never streams the
    # full (B, S, H) tensor.
    cls = last_hidden_state[:, 0, :]                                 # (B, H) f32

    # Ceil-div batch tiling: pad B to a multiple of 8 (sublane), and to a
    # multiple of TB once it exceeds one tile.  No giant-block fallback.
    def round_up(x, m):
        return ((x + m - 1) // m) * m

    b_pad = round_up(B, 8)
    if b_pad > TB:
        tb = TB
        b_pad = round_up(B, TB)
    else:
        tb = b_pad
    if b_pad != B:
        cls = jnp.pad(cls, ((0, b_pad - B), (0, 0)))
    grid = (b_pad // tb,)

    itemsize = lambda a: a.size * a.dtype.itemsize
    cost = pl.CostEstimate(
        flops=2 * b_pad * H * F + 2 * b_pad * F * C_PAD,
        transcendentals=0,
        bytes_accessed=(b_pad * H * 4 + itemsize(wc) + itemsize(bc)
                        + itemsize(wf) + itemsize(bf) + b_pad * C_PAD * 4),
    )

    out = pl.pallas_call(
        _emotion_head_kernel,
        out_shape=jax.ShapeDtypeStruct((b_pad, C_PAD), jnp.float32),
        grid_spec=pltpu.PrefetchScalarGridSpec(
            num_scalar_prefetch=0,
            grid=grid,
            in_specs=[
                pl.BlockSpec((tb, H), lambda i: (i, 0)),       # CLS rows
                pl.BlockSpec((H, F), lambda i: (0, 0)),        # conv centre tap (bf16)
                pl.BlockSpec((1, F), lambda i: (0, 0)),        # conv bias (f32)
                pl.BlockSpec((F, C_PAD), lambda i: (0, 0)),    # fc weight (bf16, padded)
                pl.BlockSpec((1, C_PAD), lambda i: (0, 0)),    # fc bias (f32, padded)
            ],
            out_specs=pl.BlockSpec((tb, C_PAD), lambda i: (i, 0)),
        ),
        compiler_params=pltpu.CompilerParams(
            dimension_semantics=("parallel",)),
        cost_estimate=cost,
    )(cls, wc, bc, wf, bf)

    return out[:B, :C]


def reference(last_hidden_state, conv_w, conv_b, fc_w, fc_b):
    """Pure-JAX (f32) mirror of the PyTorch forward (post-transformer)."""
    cls = last_hidden_state[:, 0, :]                                 # (B, H)
    xp = jnp.pad(cls[:, :, None], ((0, 0), (0, 0), (1, 1)))          # (B, H, 3)
    conv = jnp.einsum("bhk,fhk->bf", xp, conv_w) + conv_b            # (B, F)
    conv = jnp.maximum(conv, 0.0)
    pooled = conv                                                    # max over length-1 dim
    return pooled @ fc_w.T + fc_b                                    # (B, C)


if __name__ == "__main__":
    B, S = 2, 8
    key = jax.random.PRNGKey(0)
    k_h, k_cw, k_cb, k_fw, k_fb = jax.random.split(key, 5)

    # Stand-in for transformer(...).last_hidden_state
    last_hidden_state = jax.random.normal(k_h, (B, S, H), dtype=jnp.float32)

    # Deterministic synthetic parameters (module __init__ shapes).
    conv_w = 0.02 * jax.random.normal(k_cw, (F, H, K), dtype=jnp.float32)
    conv_b = 0.01 * jax.random.normal(k_cb, (F,), dtype=jnp.float32)
    fc_w = 0.05 * jax.random.normal(k_fw, (C, F), dtype=jnp.float32)
    fc_b = 0.01 * jax.random.normal(k_fb, (F,)[:0] + (C,), dtype=jnp.float32)

    params = prepare_params(conv_w, conv_b, fc_w, fc_b)              # once, at "init"
    logits = emotion_classifier_head(last_hidden_state, *params)
    logits = jax.block_until_ready(logits)

    want = reference(last_hidden_state, conv_w, conv_b, fc_w, fc_b)
    assert logits.shape == (B, C), logits.shape
    # Weights stream in bf16 (f32 accumulation), so compare against the pure
    # f32 reference with a correspondingly loose tolerance.
    err = jnp.max(jnp.abs(logits - want))
    assert jnp.allclose(logits, want, rtol=2e-2, atol=2e-2), f"max err {err}"

    print("KERNEL_OK")
</pallas_src>

<mosaic_0001>
module attributes {stable_mosaic.version = 11 : i64} {
  func.func @_emotion_head_kernel(%arg0: i32, %arg1: memref<8x768xf32, #tpu.memory_space<vmem>>, %arg2: memref<768x256xbf16, #tpu.memory_space<vmem>>, %arg3: memref<1x256xf32, #tpu.memory_space<vmem>>, %arg4: memref<256x128xbf16, #tpu.memory_space<vmem>>, %arg5: memref<1x128xf32, #tpu.memory_space<vmem>>, %arg6: memref<8x128xf32, #tpu.memory_space<vmem>>) attributes {dimension_semantics = [#tpu.dimension_semantics<parallel>], iteration_bounds = array<i64: 1>, scalar_prefetch = 0 : i64, scratch_operands = 0 : i64, tpu.core_type = #tpu.core_type<tc>, window_params = [{transform_indices = @transform_0, window_bounds = array<i64: 8, 768>}, {pipeline_mode = #tpu.pipeline_mode<synchronous>, transform_indices = @transform_1, window_bounds = array<i64: 768, 256>}, {pipeline_mode = #tpu.pipeline_mode<synchronous>, transform_indices = @transform_2, window_bounds = array<i64: 1, 256>}, {pipeline_mode = #tpu.pipeline_mode<synchronous>, transform_indices = @transform_3, window_bounds = array<i64: 256, 128>}, {pipeline_mode = #tpu.pipeline_mode<synchronous>, transform_indices = @transform_4, window_bounds = array<i64: 1, 128>}, {transform_indices = @transform_5, window_bounds = array<i64: 8, 128>}]} {
    %c0 = arith.constant 0 : index
    %c0_0 = arith.constant 0 : index
    %0 = vector.load %arg1[%c0, %c0_0] : memref<8x768xf32, #tpu.memory_space<vmem>>, vector<8x768xf32>
    %1 = arith.truncf %0 : vector<8x768xf32> to vector<8x768xbf16>
    %c0_1 = arith.constant 0 : index
    %c0_2 = arith.constant 0 : index
    %2 = vector.load %arg2[%c0_1, %c0_2] : memref<768x256xbf16, #tpu.memory_space<vmem>>, vector<768x256xbf16>
    %cst = arith.constant dense<0.000000e+00> : vector<8x256xf32>
    %3 = tpu.matmul %1, %2, %cst {dimension_numbers = #tpu.dot_dimension_numbers<[1], [0], [0], [1], [0, 0, 1, 1], [], []>} : vector<8x768xbf16>, vector<768x256xbf16>, vector<8x256xf32> -> vector<8x256xf32>
    %c0_3 = arith.constant 0 : index
    %c0_4 = arith.constant 0 : index
    %4 = vector.load %arg3[%c0_3, %c0_4] : memref<1x256xf32, #tpu.memory_space<vmem>>, vector<1x256xf32>
    %5 = vector.broadcast %4 : vector<1x256xf32> to vector<8x256xf32>
    %6 = arith.addf %3, %5 : vector<8x256xf32>
    %cst_5 = arith.constant 0.000000e+00 : f32
    %7 = vector.broadcast %cst_5 : f32 to vector<8x256xf32>
    %8 = arith.maximumf %6, %7 : vector<8x256xf32>
    %9 = arith.truncf %8 : vector<8x256xf32> to vector<8x256xbf16>
    %c0_6 = arith.constant 0 : index
    %c0_7 = arith.constant 0 : index
    %10 = vector.load %arg4[%c0_6, %c0_7] : memref<256x128xbf16, #tpu.memory_space<vmem>>, vector<256x128xbf16>
    %cst_8 = arith.constant dense<0.000000e+00> : vector<8x128xf32>
    %11 = tpu.matmul %9, %10, %cst_8 {dimension_numbers = #tpu.dot_dimension_numbers<[1], [0], [0], [1], [0, 0, 1, 1], [], []>} : vector<8x256xbf16>, vector<256x128xbf16>, vector<8x128xf32> -> vector<8x128xf32>
    %c0_9 = arith.constant 0 : index
    %c0_10 = arith.constant 0 : index
    %12 = vector.load %arg5[%c0_9, %c0_10] : memref<1x128xf32, #tpu.memory_space<vmem>>, vector<1x128xf32>
    %13 = vector.broadcast %12 : vector<1x128xf32> to vector<8x128xf32>
    %14 = arith.addf %11, %13 : vector<8x128xf32>
    %c0_11 = arith.constant 0 : index
    %c0_12 = arith.constant 0 : index
    %15 = vector.load %arg6[%c0_11, %c0_12] : memref<8x128xf32, #tpu.memory_space<vmem>>, vector<8x128xf32>
    tpu.vector_store %arg6[%c0_11, %c0_12], %14 {strides = array<i32>} : memref<8x128xf32, #tpu.memory_space<vmem>>, vector<8x128xf32>,
    return
  }
  func.func @transform_0(%arg0: i32) -> (i32, i32) {
    %c0_i32 = arith.constant 0 : i32
    %c0_i32_0 = arith.constant 0 : i32
    return %arg0, %c0_i32 : i32, i32
  }
  func.func @transform_1(%arg0: i32) -> (i32, i32) {
    %c0_i32 = arith.constant 0 : i32
    %c0_i32_0 = arith.constant 0 : i32
    %c0_i32_1 = arith.constant 0 : i32
    return %c0_i32, %c0_i32_0 : i32, i32
  }
  func.func @transform_2(%arg0: i32) -> (i32, i32) {
    %c0_i32 = arith.constant 0 : i32
    %c0_i32_0 = arith.constant 0 : i32
    %c0_i32_1 = arith.constant 0 : i32
    return %c0_i32, %c0_i32_0 : i32, i32
  }
  func.func @transform_3(%arg0: i32) -> (i32, i32) {
    %c0_i32 = arith.constant 0 : i32
    %c0_i32_0 = arith.constant 0 : i32
    %c0_i32_1 = arith.constant 0 : i32
    return %c0_i32, %c0_i32_0 : i32, i32
  }
  func.func @transform_4(%arg0: i32) -> (i32, i32) {
    %c0_i32 = arith.constant 0 : i32
    %c0_i32_0 = arith.constant 0 : i32
    %c0_i32_1 = arith.constant 0 : i32
    return %c0_i32, %c0_i32_0 : i32, i32
  }
  func.func @transform_5(%arg0: i32) -> (i32, i32) {
    %c0_i32 = arith.constant 0 : i32
    %c0_i32_0 = arith.constant 0 : i32
    return %arg0, %c0_i32 : i32, i32
  }
}

</mosaic_0001>

<llo_original>
// kernel: emotion_classifier_head.1
$region0: #{emotion_classifier_head.1}
  #allocation0 [shape = 'u32[]', space=smem, size = 0x4, offset = 0x4, fixed_abs, tag = 'smem constant byte address 0x4 - core index']
  #allocation1 [shape = 'u32[144,128]{1,0:T(1,128)}', space=vmem, size = 0x12000, scoped, tag = 'internal scratch']
  %s0 = inlined_call_operand.vmem [shape: f32[8,768], index: 0, kind: input, shape index: {}]
  %s1 = inlined_call_operand.hbm [shape: bf16[768,256], index: 1, kind: input, shape index: {}]
  %s2 = inlined_call_operand.vmem [shape: f32[1,256], index: 2, kind: input, shape index: {}]
  %s3 = inlined_call_operand.hbm [shape: bf16[256,128], index: 3, kind: input, shape index: {}]
  %s4 = inlined_call_operand.vmem [shape: f32[1,128], index: 4, kind: input, shape index: {}]
  %s5 = inlined_call_operand.vmem [shape: f32[8,128], index: 5, kind: output, shape index: {}]
  %s6 = sld [smem:[#allocation0]]
  $region38: #{emotion_classifier_head.1} parent=0
    _
  %s8 = ssub.s32 1, %s6
  %s9 = scalar_select 0, %s8, %s6
  $region1: #{emotion_classifier_head.1} parent=0
    #allocation2 [shape = 'u8[393216]{0}', space=vmem, size = 0x60000, scoped, tag = 'input window, operand 1, single buffered']
    #allocation3 [shape = 's32[1]{0}', space=sflag, size = 0x4, scoped, tag = 'scoped memory for emotion_classifier_head.1']
    #allocation4 [shape = 'u8[65536]{0}', space=vmem, size = 0x10000, scoped, tag = 'input window, operand 3, single buffered']
    #allocation5 [shape = 's32[1]{0}', space=sflag, size = 0x4, scoped, tag = 'scoped memory for emotion_classifier_head.1']
    %10 = vsyncpa [#allocation3], 0
    %11 = vsyncpa [#allocation5], 0
    // Predicated region
    $region2: #{emotion_classifier_head.1} parent=1 // pred_check
      _
    $region3: #{emotion_classifier_head.1} parent=1 // pred_check_branch
      %13 = sbr.rel (0) target = $region5
    $region4: #{emotion_classifier_head.1} parent=1 // pred_region
      _
    $region5: #{emotion_classifier_head.1} parent=1 // pred_fallthru
      _
    // Predicated region
    $region6: #{emotion_classifier_head.1} parent=1 // pred_check
      _
    $region7: #{emotion_classifier_head.1} parent=1 // pred_check_branch
      %15 = sbr.rel (0) target = $region9
    $region8: #{emotion_classifier_head.1} parent=1 // pred_region
      %s17 = ssub.s32 12288, 12288
      %18 = vsyncadd [#allocation3], %s17
      %s19 = sshll.u32 [#allocation2], 4
      %s20 = int_to_ptr.vmem [resolvable:$true] %s19
      %25 = dma.hbm_to_vmem [thread:$0]  %s1, 12288, %s20, [#allocation3], 128, 128, 8
    $region9: #{emotion_classifier_head.1} parent=1 // pred_fallthru
      _
    // Predicated region
    $region10: #{emotion_classifier_head.1} parent=1 // pred_check
      _
    $region11: #{emotion_classifier_head.1} parent=1 // pred_check_branch
      %27 = sbr.rel (0) target = $region13
    $region12: #{emotion_classifier_head.1} parent=1 // pred_region
      _
    $region13: #{emotion_classifier_head.1} parent=1 // pred_fallthru
      _
    // Predicated region
    $region14: #{emotion_classifier_head.1} parent=1 // pred_check
      _
    $region15: #{emotion_classifier_head.1} parent=1 // pred_check_branch
      %29 = sbr.rel (0) target = $region17
    $region16: #{emotion_classifier_head.1} parent=1 // pred_region
      %s31 = ssub.s32 2048, 2048
      %32 = vsyncadd [#allocation5], %s31
      %s33 = sshll.u32 [#allocation4], 4
      %s34 = int_to_ptr.vmem [resolvable:$true] %s33
      %39 = dma.hbm_to_vmem [thread:$0]  %s3, 2048, %s34, [#allocation5], 64, 64, 4
    $region17: #{emotion_classifier_head.1} parent=1 // pred_fallthru
      _
    // Predicated region
    $region18: #{emotion_classifier_head.1} parent=1 // pred_check
      _
    $region19: #{emotion_classifier_head.1} parent=1 // pred_check_branch
      %41 = sbr.rel (0) target = $region21
    $region20: #{emotion_classifier_head.1} parent=1 // pred_region
      _
    $region21: #{emotion_classifier_head.1} parent=1 // pred_fallthru
      _
    // Predicated region
    $region22: #{emotion_classifier_head.1} parent=1 // pred_check
      _
    $region23: #{emotion_classifier_head.1} parent=1 // pred_check_branch
      %43 = sbr.rel (0) target = $region25
    $region24: #{emotion_classifier_head.1} parent=1 // pred_region
      %44 = dma.done [#allocation3], 12288
    $region25: #{emotion_classifier_head.1} parent=1 // pred_fallthru
      _
    // Predicated region
    $region26: #{emotion_classifier_head.1} parent=1 // pred_check
      _
    $region27: #{emotion_classifier_head.1} parent=1 // pred_check_branch
      %46 = sbr.rel (0) target = $region29
    $region28: #{emotion_classifier_head.1} parent=1 // pred_region
      %47 = dma.done [#allocation5], 2048
    $region29: #{emotion_classifier_head.1} parent=1 // pred_fallthru
      _
    %v49 = vld [vmem:[%s0] sm:$0xff]
    %v50 = vld [vmem:[%s0 + $0x8] sm:$0xff]
    %v51 = vld [vmem:[%s0 + $0x10] sm:$0xff]
    %v52 = vld [vmem:[%s0 + $0x18] sm:$0xff]
    %v53 = vld [vmem:[%s0 + $0x20] sm:$0xff]
    %v54 = vld [vmem:[%s0 + $0x28] sm:$0xff]
    %v55 = vpack.c.bf16 %v49, %v49
    %v56 = vpack.c.bf16 %v50, %v50
    %v57 = vpack.c.bf16 %v51, %v51
    %v58 = vpack.c.bf16 %v52, %v52
    %v59 = vpack.c.bf16 %v53, %v53
    %v60 = vpack.c.bf16 %v54, %v54
    %v61 = vld [vmem:[#allocation2] sm:$0xff]
    %v62 = vld [vmem:[#allocation2 + $0x8] sm:$0xff]
    %v63 = vld [vmem:[#allocation2 + $0x10] sm:$0xff]
    %v64 = vld [vmem:[#allocation2 + $0x18] sm:$0xff]
    %v65 = vld [vmem:[#allocation2 + $0x20] sm:$0xff]
    %v66 = vld [vmem:[#allocation2 + $0x28] sm:$0xff]
    %v67 = vld [vmem:[#allocation2 + $0x30] sm:$0xff]
    %v68 = vld [vmem:[#allocation2 + $0x38] sm:$0xff]
    %v69 = vld [vmem:[#allocation2 + $0x40] sm:$0xff]
    %v70 = vld [vmem:[#allocation2 + $0x48] sm:$0xff]
    %v71 = vld [vmem:[#allocation2 + $0x50] sm:$0xff]
    %v72 = vld [vmem:[#allocation2 + $0x58] sm:$0xff]
    %v73 = vld [vmem:[#allocation2 + $0x60] sm:$0xff]
    %v74 = vld [vmem:[#allocation2 + $0x68] sm:$0xff]
    %v75 = vld [vmem:[#allocation2 + $0x70] sm:$0xff]
    %v76 = vld [vmem:[#allocation2 + $0x78] sm:$0xff]
    %v77 = vld [vmem:[#allocation2 + $0x80] sm:$0xff]
    %v78 = vld [vmem:[#allocation2 + $0x88] sm:$0xff]
    %v79 = vld [vmem:[#allocation2 + $0x90] sm:$0xff]
    %v80 = vld [vmem:[#allocation2 + $0x98] sm:$0xff]
    %v81 = vld [vmem:[#allocation2 + $0xa0] sm:$0xff]
    %v82 = vld [vmem:[#allocation2 + $0xa8] sm:$0xff]
    %v83 = vld [vmem:[#allocation2 + $0xb0] sm:$0xff]
    %v84 = vld [vmem:[#allocation2 + $0xb8] sm:$0xff]
    %v85 = vld [vmem:[#allocation2 + $0xc0] sm:$0xff]
    %v86 = vld [vmem:[#allocation2 + $0xc8] sm:$0xff]
    %v87 = vld [vmem:[#allocation2 + $0xd0] sm:$0xff]
    %v88 = vld [vmem:[#allocation2 + $0xd8] sm:$0xff]
    %v89 = vld [vmem:[#allocation2 + $0xe0] sm:$0xff]
    %v90 = vld [vmem:[#allocation2 + $0xe8] sm:$0xff]
    %v91 = vld [vmem:[#allocation2 + $0xf0] sm:$0xff]
    %v92 = vld [vmem:[#allocation2 + $0xf8] sm:$0xff]
    %v93 = vld [vmem:[#allocation2 + $0x100] sm:$0xff]
    %v94 = vld [vmem:[#allocation2 + $0x108] sm:$0xff]
    %v95 = vld [vmem:[#allocation2 + $0x110] sm:$0xff]
    %v96 = vld [vmem:[#allocation2 + $0x118] sm:$0xff]
    %v97 = vld [vmem:[#allocation2 + $0x120] sm:$0xff]
    %v98 = vld [vmem:[#allocation2 + $0x128] sm:$0xff]
    %v99 = vld [vmem:[#allocation2 + $0x130] sm:$0xff]
    %v100 = vld [vmem:[#allocation2 + $0x138] sm:$0xff]
    %v101 = vld [vmem:[#allocation2 + $0x140] sm:$0xff]
    %v102 = vld [vmem:[#allocation2 + $0x148] sm:$0xff]
    %v103 = vld [vmem:[#allocation2 + $0x150] sm:$0xff]
    %v104 = vld [vmem:[#allocation2 + $0x158] sm:$0xff]
    %v105 = vld [vmem:[#allocation2 + $0x160] sm:$0xff]
    %v106 = vld [vmem:[#allocation2 + $0x168] sm:$0xff]
    %v107 = vld [vmem:[#allocation2 + $0x170] sm:$0xff]
    %v108 = vld [vmem:[#allocation2 + $0x178] sm:$0xff]
    %v109 = vld [vmem:[#allocation2 + $0x180] sm:$0xff]
    %v110 = vld [vmem:[#allocation2 + $0x188] sm:$0xff]
    %v111 = vld [vmem:[#allocation2 + $0x190] sm:$0xff]
    %v112 = vld [vmem:[#allocation2 + $0x198] sm:$0xff]
    %v113 = vld [vmem:[#allocation2 + $0x1a0] sm:$0xff]
    %v114 = vld [vmem:[#allocation2 + $0x1a8] sm:$0xff]
    %v115 = vld [vmem:[#allocation2 + $0x1b0] sm:$0xff]
    %v116 = vld [vmem:[#allocation2 + $0x1b8] sm:$0xff]
    %v117 = vld [vmem:[#allocation2 + $0x1c0] sm:$0xff]
    %v118 = vld [vmem:[#allocation2 + $0x1c8] sm:$0xff]
    %v119 = vld [vmem:[#allocation2 + $0x1d0] sm:$0xff]
    %v120 = vld [vmem:[#allocation2 + $0x1d8] sm:$0xff]
    %v121 = vld [vmem:[#allocation2 + $0x1e0] sm:$0xff]
    %v122 = vld [vmem:[#allocation2 + $0x1e8] sm:$0xff]
    %v123 = vld [vmem:[#allocation2 + $0x1f0] sm:$0xff]
    %v124 = vld [vmem:[#allocation2 + $0x1f8] sm:$0xff]
    %v125 = vld [vmem:[#allocation2 + $0x200] sm:$0xff]
    %v126 = vld [vmem:[#allocation2 + $0x208] sm:$0xff]
    %v127 = vld [vmem:[#allocation2 + $0x210] sm:$0xff]
    %v128 = vld [vmem:[#allocation2 + $0x218] sm:$0xff]
    %v129 = vld [vmem:[#allocation2 + $0x220] sm:$0xff]
    %v130 = vld [vmem:[#allocation2 + $0x228] sm:$0xff]
    %v131 = vld [vmem:[#allocation2 + $0x230] sm:$0xff]
    %v132 = vld [vmem:[#allocation2 + $0x238] sm:$0xff]
    %v133 = vld [vmem:[#allocation2 + $0x240] sm:$0xff]
    %v134 = vld [vmem:[#allocation2 + $0x248] sm:$0xff]
    %v135 = vld [vmem:[#allocation2 + $0x250] sm:$0xff]
    %v136 = vld [vmem:[#allocation2 + $0x258] sm:$0xff]
    %v137 = vld [vmem:[#allocation2 + $0x260] sm:$0xff]
    %v138 = vld [vmem:[#allocation2 + $0x268] sm:$0xff]
    %v139 = vld [vmem:[#allocation2 + $0x270] sm:$0xff]
    %v140 = vld [vmem:[#allocation2 + $0x278] sm:$0xff]
    %v141 = vld [vmem:[#allocation2 + $0x280] sm:$0xff]
    %v142 = vld [vmem:[#allocation2 + $0x288] sm:$0xff]
    %v143 = vld [vmem:[#allocation2 + $0x290] sm:$0xff]
    %v144 = vld [vmem:[#allocation2 + $0x298] sm:$0xff]
    %v145 = vld [vmem:[#allocation2 + $0x2a0] sm:$0xff]
    %v146 = vld [vmem:[#allocation2 + $0x2a8] sm:$0xff]
    %v147 = vld [vmem:[#allocation2 + $0x2b0] sm:$0xff]
    %v148 = vld [vmem:[#allocation2 + $0x2b8] sm:$0xff]
    %v149 = vld [vmem:[#allocation2 + $0x2c0] sm:$0xff]
    %v150 = vld [vmem:[#allocation2 + $0x2c8] sm:$0xff]
    %v151 = vld [vmem:[#allocation2 + $0x2d0] sm:$0xff]
    %v152 = vld [vmem:[#allocation2 + $0x2d8] sm:$0xff]
    %v153 = vld [vmem:[#allocation2 + $0x2e0] sm:$0xff]
    %v154 = vld [vmem:[#allocation2 + $0x2e8] sm:$0xff]
    %v155 = vld [vmem:[#allocation2 + $0x2f0] sm:$0xff]
    %v156 = vld [vmem:[#allocation2 + $0x2f8] sm:$0xff]
    %v157 = vld [vmem:[%s2] sm:$0x3]
    %v159 = vlaneseq
    %v160 = vshrl.u32 %v159, 7
    %v161 = vsub.s32 0, %v160
    %v162 = vrot.slane %v157, %v161
    %v163 = vlaneseq
    %v164 = vshrl.u32 %v163, 7
    %v165 = vsub.s32 1, %v164
    %v166 = vrot.slane %v157, %v165
    %v265 = vunpack.c.l.b16 %v61
    %v266 = vunpack.c.h.b16 %v61
    %v267 = vunpack.c.l.b16 %v62
    %v268 = vunpack.c.h.b16 %v62
    %v269 = vunpack.c.l.b16 %v63
    %v270 = vunpack.c.h.b16 %v63
    %v271 = vunpack.c.l.b16 %v64
    %v272 = vunpack.c.h.b16 %v64
    %v273 = vunpack.c.l.b16 %v65
    %v274 = vunpack.c.h.b16 %v65
    %v275 = vunpack.c.l.b16 %v66
    %v276 = vunpack.c.h.b16 %v66
    %v277 = vunpack.c.l.b16 %v67
    %v278 = vunpack.c.h.b16 %v67
    %v279 = vunpack.c.l.b16 %v68
    %v280 = vunpack.c.h.b16 %v68
    %v281 = vunpack.c.l.b16 %v69
    %v282 = vunpack.c.h.b16 %v69
    %v283 = vunpack.c.l.b16 %v70
    %v284 = vunpack.c.h.b16 %v70
    %v285 = vunpack.c.l.b16 %v71
    %v286 = vunpack.c.h.b16 %v71
    %v287 = vunpack.c.l.b16 %v72
    %v288 = vunpack.c.h.b16 %v72
    %v289 = vunpack.c.l.b16 %v73
    %v290 = vunpack.c.h.b16 %v73
    %v291 = vunpack.c.l.b16 %v74
    %v292 = vunpack.c.h.b16 %v74
    %v293 = vunpack.c.l.b16 %v75
    %v294 = vunpack.c.h.b16 %v75
    %v295 = vunpack.c.l.b16 %v76
    %v296 = vunpack.c.h.b16 %v76
    %v297 = vunpack.c.l.b16 %v77
    %v298 = vunpack.c.h.b16 %v77
    %v299 = vunpack.c.l.b16 %v78
    %v300 = vunpack.c.h.b16 %v78
    %v301 = vunpack.c.l.b16 %v79
    %v302 = vunpack.c.h.b16 %v79
    %v303 = vunpack.c.l.b16 %v80
    %v304 = vunpack.c.h.b16 %v80
    %v305 = vunpack.c.l.b16 %v81
    %v306 = vunpack.c.h.b16 %v81
    %v307 = vunpack.c.l.b16 %v82
    %v308 = vunpack.c.h.b16 %v82
    %v309 = vunpack.c.l.b16 %v83
    %v310 = vunpack.c.h.b16 %v83
    %v311 = vunpack.c.l.b16 %v84
    %v312 = vunpack.c.h.b16 %v84
    %v313 = vunpack.c.l.b16 %v85
    %v314 = vunpack.c.h.b16 %v85
    %v315 = vunpack.c.l.b16 %v86
    %v316 = vunpack.c.h.b16 %v86
    %v317 = vunpack.c.l.b16 %v87
    %v318 = vunpack.c.h.b16 %v87
    %v319 = vunpack.c.l.b16 %v88
    %v320 = vunpack.c.h.b16 %v88
    %v321 = vunpack.c.l.b16 %v89
    %v322 = vunpack.c.h.b16 %v89
    %v323 = vunpack.c.l.b16 %v90
    %v324 = vunpack.c.h.b16 %v90
    %v325 = vunpack.c.l.b16 %v91
    %v326 = vunpack.c.h.b16 %v91
    %v327 = vunpack.c.l.b16 %v92
    %v328 = vunpack.c.h.b16 %v92
    %v329 = vunpack.c.l.b16 %v93
    %v330 = vunpack.c.h.b16 %v93
    %v331 = vunpack.c.l.b16 %v94
    %v332 = vunpack.c.h.b16 %v94
    %v333 = vunpack.c.l.b16 %v95
    %v334 = vunpack.c.h.b16 %v95
    %v335 = vunpack.c.l.b16 %v96
    %v336 = vunpack.c.h.b16 %v96
    %v337 = vunpack.c.l.b16 %v97
    %v338 = vunpack.c.h.b16 %v97
    %v339 = vunpack.c.l.b16 %v98
    %v340 = vunpack.c.h.b16 %v98
    %v341 = vunpack.c.l.b16 %v99
    %v342 = vunpack.c.h.b16 %v99
    %v343 = vunpack.c.l.b16 %v100
    %v344 = vunpack.c.h.b16 %v100
    %v345 = vunpack.c.l.b16 %v101
    %v346 = vunpack.c.h.b16 %v101
    %v347 = vunpack.c.l.b16 %v102
    %v348 = vunpack.c.h.b16 %v102
    %v349 = vunpack.c.l.b16 %v103
    %v350 = vunpack.c.h.b16 %v103
    %v351 = vunpack.c.l.b16 %v104
    %v352 = vunpack.c.h.b16 %v104
    %v353 = vunpack.c.l.b16 %v105
    %v354 = vunpack.c.h.b16 %v105
    %v355 = vunpack.c.l.b16 %v106
    %v356 = vunpack.c.h.b16 %v106
    %v357 = vunpack.c.l.b16 %v107
    %v358 = vunpack.c.h.b16 %v107
    %v359 = vunpack.c.l.b16 %v108
    %v360 = vunpack.c.h.b16 %v108
    %v361 = vunpack.c.l.b16 %v109
    %v362 = vunpack.c.h.b16 %v109
    %v363 = vunpack.c.l.b16 %v110
    %v364 = vunpack.c.h.b16 %v110
    %v365 = vunpack.c.l.b16 %v111
    %v366 = vunpack.c.h.b16 %v111
    %v367 = vunpack.c.l.b16 %v112
    %v368 = vunpack.c.h.b16 %v112
    %v369 = vunpack.c.l.b16 %v113
    %v370 = vunpack.c.h.b16 %v113
    %v371 = vunpack.c.l.b16 %v114
    %v372 = vunpack.c.h.b16 %v114
    %v373 = vunpack.c.l.b16 %v115
    %v374 = vunpack.c.h.b16 %v115
    %v375 = vunpack.c.l.b16 %v116
    %v376 = vunpack.c.h.b16 %v116
    %v377 = vunpack.c.l.b16 %v117
    %v378 = vunpack.c.h.b16 %v117
    %v379 = vunpack.c.l.b16 %v118
    %v380 = vunpack.c.h.b16 %v118
    %v381 = vunpack.c.l.b16 %v119
    %v382 = vunpack.c.h.b16 %v119
    %v383 = vunpack.c.l.b16 %v120
    %v384 = vunpack.c.h.b16 %v120
    %v385 = vunpack.c.l.b16 %v121
    %v386 = vunpack.c.h.b16 %v121
    %v387 = vunpack.c.l.b16 %v122
    %v388 = vunpack.c.h.b16 %v122
    %v389 = vunpack.c.l.b16 %v123
    %v390 = vunpack.c.h.b16 %v123
    %v391 = vunpack.c.l.b16 %v124
    %v392 = vunpack.c.h.b16 %v124
    %v393 = vunpack.c.l.b16 %v125
    %v394 = vunpack.c.h.b16 %v125
    %v395 = vunpack.c.l.b16 %v126
    %v396 = vunpack.c.h.b16 %v126
    %v397 = vunpack.c.l.b16 %v127
    %v398 = vunpack.c.h.b16 %v127
    %v399 = vunpack.c.l.b16 %v128
    %v400 = vunpack.c.h.b16 %v128
    %v401 = vunpack.c.l.b16 %v129
    %v402 = vunpack.c.h.b16 %v129
    %v403 = vunpack.c.l.b16 %v130
    %v404 = vunpack.c.h.b16 %v130
    %v405 = vunpack.c.l.b16 %v131
    %v406 = vunpack.c.h.b16 %v131
    %v407 = vunpack.c.l.b16 %v132
    %v408 = vunpack.c.h.b16 %v132
    %v409 = vunpack.c.l.b16 %v133
    %v410 = vunpack.c.h.b16 %v133
    %v411 = vunpack.c.l.b16 %v134
    %v412 = vunpack.c.h.b16 %v134
    %v413 = vunpack.c.l.b16 %v135
    %v414 = vunpack.c.h.b16 %v135
    %v415 = vunpack.c.l.b16 %v136
    %v416 = vunpack.c.h.b16 %v136
    %v417 = vunpack.c.l.b16 %v137
    %v418 = vunpack.c.h.b16 %v137
    %v419 = vunpack.c.l.b16 %v138
    %v420 = vunpack.c.h.b16 %v138
    %v421 = vunpack.c.l.b16 %v139
    %v422 = vunpack.c.h.b16 %v139
    %v423 = vunpack.c.l.b16 %v140
    %v424 = vunpack.c.h.b16 %v140
    %v425 = vunpack.c.l.b16 %v141
    %v426 = vunpack.c.h.b16 %v141
    %v427 = vunpack.c.l.b16 %v142
    %v428 = vunpack.c.h.b16 %v142
    %v429 = vunpack.c.l.b16 %v143
    %v430 = vunpack.c.h.b16 %v143
    %v431 = vunpack.c.l.b16 %v144
    %v432 = vunpack.c.h.b16 %v144
    %v433 = vunpack.c.l.b16 %v145
    %v434 = vunpack.c.h.b16 %v145
    %v435 = vunpack.c.l.b16 %v146
    %v436 = vunpack.c.h.b16 %v146
    %v437 = vunpack.c.l.b16 %v147
    %v438 = vunpack.c.h.b16 %v147
    %v439 = vunpack.c.l.b16 %v148
    %v440 = vunpack.c.h.b16 %v148
    %v441 = vunpack.c.l.b16 %v149
    %v442 = vunpack.c.h.b16 %v149
    %v443 = vunpack.c.l.b16 %v150
    %v444 = vunpack.c.h.b16 %v150
    %v445 = vunpack.c.l.b16 %v151
    %v446 = vunpack.c.h.b16 %v151
    %v447 = vunpack.c.l.b16 %v152
    %v448 = vunpack.c.h.b16 %v152
    %v449 = vunpack.c.l.b16 %v153
    %v450 = vunpack.c.h.b16 %v153
    %v451 = vunpack.c.l.b16 %v154
    %v452 = vunpack.c.h.b16 %v154
    %v453 = vunpack.c.l.b16 %v155
    %v454 = vunpack.c.h.b16 %v155
    %v455 = vunpack.c.l.b16 %v156
    %v456 = vunpack.c.h.b16 %v156
    %v457 = vpack.c.b16 %v267, %v265
    %v458 = vpack.c.b16 %v268, %v266
    %v459 = vpack.c.b16 %v271, %v269
    %v460 = vpack.c.b16 %v272, %v270
    %v461 = vpack.c.b16 %v275, %v273
    %v462 = vpack.c.b16 %v276, %v274
    %v463 = vpack.c.b16 %v279, %v277
    %v464 = vpack.c.b16 %v280, %v278
    %v465 = vpack.c.b16 %v283, %v281
    %v466 = vpack.c.b16 %v284, %v282
    %v467 = vpack.c.b16 %v287, %v285
    %v468 = vpack.c.b16 %v288, %v286
    %v469 = vpack.c.b16 %v291, %v289
    %v470 = vpack.c.b16 %v292, %v290
    %v471 = vpack.c.b16 %v295, %v293
    %v472 = vpack.c.b16 %v296, %v294
    %v473 = vpack.c.b16 %v299, %v297
    %v474 = vpack.c.b16 %v300, %v298
    %v475 = vpack.c.b16 %v303, %v301
    %v476 = vpack.c.b16 %v304, %v302
    %v477 = vpack.c.b16 %v307, %v305
    %v478 = vpack.c.b16 %v308, %v306
    %v479 = vpack.c.b16 %v311, %v309
    %v480 = vpack.c.b16 %v312, %v310
    %v481 = vpack.c.b16 %v315, %v313
    %v482 = vpack.c.b16 %v316, %v314
    %v483 = vpack.c.b16 %v319, %v317
    %v484 = vpack.c.b16 %v320, %v318
    %v485 = vpack.c.b16 %v323, %v321
    %v486 = vpack.c.b16 %v324, %v322
    %v487 = vpack.c.b16 %v327, %v325
    %v488 = vpack.c.b16 %v328, %v326
    %v489 = vpack.c.b16 %v331, %v329
    %v490 = vpack.c.b16 %v332, %v330
    %v491 = vpack.c.b16 %v335, %v333
    %v492 = vpack.c.b16 %v336, %v334
    %v493 = vpack.c.b16 %v339, %v337
    %v494 = vpack.c.b16 %v340, %v338
    %v495 = vpack.c.b16 %v343, %v341
    %v496 = vpack.c.b16 %v344, %v342
    %v497 = vpack.c.b16 %v347, %v345
    %v498 = vpack.c.b16 %v348, %v346
    %v499 = vpack.c.b16 %v351, %v349
    %v500 = vpack.c.b16 %v352, %v350
    %v501 = vpack.c.b16 %v355, %v353
    %v502 = vpack.c.b16 %v356, %v354
    %v503 = vpack.c.b16 %v359, %v357
    %v504 = vpack.c.b16 %v360, %v358
    %v505 = vpack.c.b16 %v363, %v361
    %v506 = vpack.c.b16 %v364, %v362
    %v507 = vpack.c.b16 %v367, %v365
    %v508 = vpack.c.b16 %v368, %v366
    %v509 = vpack.c.b16 %v371, %v369
    %v510 = vpack.c.b16 %v372, %v370
    %v511 = vpack.c.b16 %v375, %v373
    %v512 = vpack.c.b16 %v376, %v374
    %v513 = vpack.c.b16 %v379, %v377
    %v514 = vpack.c.b16 %v380, %v378
    %v515 = vpack.c.b16 %v383, %v381
    %v516 = vpack.c.b16 %v384, %v382
    %v517 = vpack.c.b16 %v387, %v385
    %v518 = vpack.c.b16 %v388, %v386
    %v519 = vpack.c.b16 %v391, %v389
    %v520 = vpack.c.b16 %v392, %v390
    %v521 = vpack.c.b16 %v395, %v393
    %v522 = vpack.c.b16 %v396, %v394
    %v523 = vpack.c.b16 %v399, %v397
    %v524 = vpack.c.b16 %v400, %v398
    %v525 = vpack.c.b16 %v403, %v401
    %v526 = vpack.c.b16 %v404, %v402
    %v527 = vpack.c.b16 %v407, %v405
    %v528 = vpack.c.b16 %v408, %v406
    %v529 = vpack.c.b16 %v411, %v409
    %v530 = vpack.c.b16 %v412, %v410
    %v531 = vpack.c.b16 %v415, %v413
    %v532 = vpack.c.b16 %v416, %v414
    %v533 = vpack.c.b16 %v419, %v417
    %v534 = vpack.c.b16 %v420, %v418
    %v535 = vpack.c.b16 %v423, %v421
    %v536 = vpack.c.b16 %v424, %v422
    %v537 = vpack.c.b16 %v427, %v425
    %v538 = vpack.c.b16 %v428, %v426
    %v539 = vpack.c.b16 %v431, %v429
    %v540 = vpack.c.b16 %v432, %v430
    %v541 = vpack.c.b16 %v435, %v433
    %v542 = vpack.c.b16 %v436, %v434
    %v543 = vpack.c.b16 %v439, %v437
    %v544 = vpack.c.b16 %v440, %v438
    %v545 = vpack.c.b16 %v443, %v441
    %v546 = vpack.c.b16 %v444, %v442
    %v547 = vpack.c.b16 %v447, %v445
    %v548 = vpack.c.b16 %v448, %v446
    %v549 = vpack.c.b16 %v451, %v449
    %v550 = vpack.c.b16 %v452, %v450
    %v551 = vpack.c.b16 %v455, %v453
    %v552 = vpack.c.b16 %v456, %v454
    %649 = vmatprep.subr.bf16.mxu0 %v458
    %650 = vmatpush1.bf16.msra.mxu0 %v457
    %651 = vmatprep.subr.bf16.mxu0 %v460
    %652 = vmatpush1.bf16.msra.mxu0 %v459
    %653 = vmatprep.subr.bf16.mxu0 %v462
    %654 = vmatpush1.bf16.msra.mxu0 %v461
    %655 = vmatprep.subr.bf16.mxu0 %v464
    %656 = vmatpush1.bf16.msra.mxu0 %v463
    %657 = vmatprep.subr.bf16.mxu0 %v466
    %658 = vmatpush1.bf16.msra.mxu0 %v465
    %659 = vmatprep.subr.bf16.mxu0 %v468
    %660 = vmatpush1.bf16.msra.mxu0 %v467
    %661 = vmatprep.subr.bf16.mxu0 %v470
    %662 = vmatpush1.bf16.msra.mxu0 %v469
    %663 = vmatprep.subr.bf16.mxu0 %v472
    %664 = vmatpush1.bf16.msra.mxu0 %v471
    %665 = vmatprep.subr.bf16.mxu0 %v474
    %666 = vmatpush1.bf16.msra.mxu0 %v473
    %667 = vmatprep.subr.bf16.mxu0 %v476
    %668 = vmatpush1.bf16.msra.mxu0 %v475
    %669 = vmatprep.subr.bf16.mxu0 %v478
    %670 = vmatpush1.bf16.msra.mxu0 %v477
    %671 = vmatprep.subr.bf16.mxu0 %v480
    %672 = vmatpush1.bf16.msra.mxu0 %v479
    %673 = vmatprep.subr.bf16.mxu0 %v482
    %674 = vmatpush1.bf16.msra.mxu0 %v481
    %675 = vmatprep.subr.bf16.mxu0 %v484
    %676 = vmatpush1.bf16.msra.mxu0 %v483
    %677 = vmatprep.subr.bf16.mxu0 %v486
    %678 = vmatpush1.bf16.msra.mxu0 %v485
    %679 = vmatprep.subr.bf16.mxu0 %v488
    %680 = vmatpush1.bf16.msra.mxu0 %v487
    %681 = vmatprep.mubr.bf16.mxu0 %v56
    %682 = vmatmul.mubr.bf16.gmra.mrb[0].mxu0 %v55
    %v683 = vpop.f32.mrb[0].mxu0
    %v684 = vadd.f32 %v162, %v683
    %v685 = vpop.f32.mrb[0].mxu0
    %v686 = vadd.f32 %v166, %v685
    %v687 = vpop.f32.mrb[0].mxu0
    %v688 = vpop.f32.mrb[0].mxu0
    %689 = vdwg.mxu0
    %690 = vmatprep.subr.bf16.mxu0 %v490
    %691 = vmatpush1.bf16.msra.mxu0 %v489
    %692 = vmatprep.subr.bf16.mxu0 %v492
    %693 = vmatpush1.bf16.msra.mxu0 %v491
    %694 = vmatprep.subr.bf16.mxu0 %v494
    %695 = vmatpush1.bf16.msra.mxu0 %v493
    %696 = vmatprep.subr.bf16.mxu0 %v496
    %697 = vmatpush1.bf16.msra.mxu0 %v495
    %698 = vmatprep.subr.bf16.mxu0 %v498
    %699 = vmatpush1.bf16.msra.mxu0 %v497
    %700 = vmatprep.subr.bf16.mxu0 %v500
    %701 = vmatpush1.bf16.msra.mxu0 %v499
    %702 = vmatprep.subr.bf16.mxu0 %v502
    %703 = vmatpush1.bf16.msra.mxu0 %v501
    %704 = vmatprep.subr.bf16.mxu0 %v504
    %705 = vmatpush1.bf16.msra.mxu0 %v503
    %706 = vmatprep.subr.bf16.mxu0 %v506
    %707 = vmatpush1.bf16.msra.mxu0 %v505
    %708 = vmatprep.subr.bf16.mxu0 %v508
    %709 = vmatpush1.bf16.msra.mxu0 %v507
    %710 = vmatprep.subr.bf16.mxu0 %v510
    %711 = vmatpush1.bf16.msra.mxu0 %v509
    %712 = vmatprep.subr.bf16.mxu0 %v512
    %713 = vmatpush1.bf16.msra.mxu0 %v511
    %714 = vmatprep.subr.bf16.mxu0 %v514
    %715 = vmatpush1.bf16.msra.mxu0 %v513
    %716 = vmatprep.subr.bf16.mxu0 %v516
    %717 = vmatpush1.bf16.msra.mxu0 %v515
    %718 = vmatprep.subr.bf16.mxu0 %v518
    %719 = vmatpush1.bf16.msra.mxu0 %v517
    %720 = vmatprep.subr.bf16.mxu0 %v520
    %721 = vmatpush1.bf16.msra.mxu0 %v519
    %722 = vmatprep.mubr.bf16.mxu0 %v58
    %723 = vmatmul.mubr.bf16.gmra.mrb[0].mxu0 %v57
    %v724 = vpop.f32.mrb[0].mxu0
    %v725 = vadd.f32 %v684, %v724
    %v726 = vpop.f32.mrb[0].mxu0
    %v727 = vadd.f32 %v686, %v726
    %v728 = vpop.f32.mrb[0].mxu0
    %v729 = vpop.f32.mrb[0].mxu0
    %730 = vdwg.mxu0
    %731 = vmatprep.subr.bf16.mxu0 %v522
    %732 = vmatpush1.bf16.msra.mxu0 %v521
    %733 = vmatprep.subr.bf16.mxu0 %v524
    %734 = vmatpush1.bf16.msra.mxu0 %v523
    %735 = vmatprep.subr.bf16.mxu0 %v526
    %736 = vmatpush1.bf16.msra.mxu0 %v525
    %737 = vmatprep.subr.bf16.mxu0 %v528
    %738 = vmatpush1.bf16.msra.mxu0 %v527
    %739 = vmatprep.subr.bf16.mxu0 %v530
    %740 = vmatpush1.bf16.msra.mxu0 %v529
    %741 = vmatprep.subr.bf16.mxu0 %v532
    %742 = vmatpush1.bf16.msra.mxu0 %v531
    %743 = vmatprep.subr.bf16.mxu0 %v534
    %744 = vmatpush1.bf16.msra.mxu0 %v533
    %745 = vmatprep.subr.bf16.mxu0 %v536
    %746 = vmatpush1.bf16.msra.mxu0 %v535
    %747 = vmatprep.subr.bf16.mxu0 %v538
    %748 = vmatpush1.bf16.msra.mxu0 %v537
    %749 = vmatprep.subr.bf16.mxu0 %v540
    %750 = vmatpush1.bf16.msra.mxu0 %v539
    %751 = vmatprep.subr.bf16.mxu0 %v542
    %752 = vmatpush1.bf16.msra.mxu0 %v541
    %753 = vmatprep.subr.bf16.mxu0 %v544
    %754 = vmatpush1.bf16.msra.mxu0 %v543
    %755 = vmatprep.subr.bf16.mxu0 %v546
    %756 = vmatpush1.bf16.msra.mxu0 %v545
    %757 = vmatprep.subr.bf16.mxu0 %v548
    %758 = vmatpush1.bf16.msra.mxu0 %v547
    %759 = vmatprep.subr.bf16.mxu0 %v550
    %760 = vmatpush1.bf16.msra.mxu0 %v549
    %761 = vmatprep.subr.bf16.mxu0 %v552
    %762 = vmatpush1.bf16.msra.mxu0 %v551
    %763 = vmatprep.mubr.bf16.mxu0 %v60
    %764 = vmatmul.mubr.bf16.gmra.mrb[0].mxu0 %v59
    %v765 = vpop.f32.mrb[0].mxu0
    %v766 = vadd.f32 %v725, %v765
    %v767 = vpop.f32.mrb[0].mxu0
    %v768 = vadd.f32 %v727, %v767
    %v769 = vpop.f32.mrb[0].mxu0
    %v770 = vpop.f32.mrb[0].mxu0
    %771 = vdwg.mxu0
    %v772 = vmax.f32 %v766, 0.0
    %v773 = vmax.f32 %v768, 0.0
    %v774 = vpack.c.bf16 %v772, %v772
    %v775 = vpack.c.bf16 %v773, %v773
    %v776 = vld [vmem:[#allocation4] sm:$0xf]
    %v777 = vld [vmem:[#allocation4 + $0x4] sm:$0xf]
    %v778 = vld [vmem:[#allocation4 + $0x8] sm:$0xf]
    %v779 = vld [vmem:[#allocation4 + $0xc] sm:$0xf]
    %v780 = vld [vmem:[#allocation4 + $0x10] sm:$0xf]
    %v781 = vld [vmem:[#allocation4 + $0x14] sm:$0xf]
    %v782 = vld [vmem:[#allocation4 + $0x18] sm:$0xf]
    %v783 = vld [vmem:[#allocation4 + $0x1c] sm:$0xf]
    %v784 = vld [vmem:[#allocation4 + $0x20] sm:$0xf]
    %v785 = vld [vmem:[#allocation4 + $0x24] sm:$0xf]
    %v786 = vld [vmem:[#allocation4 + $0x28] sm:$0xf]
    %v787 = vld [vmem:[#allocation4 + $0x2c] sm:$0xf]
    %v788 = vld [vmem:[#allocation4 + $0x30] sm:$0xf]
    %v789 = vld [vmem:[#allocation4 + $0x34] sm:$0xf]
    %v790 = vld [vmem:[#allocation4 + $0x38] sm:$0xf]
    %v791 = vld [vmem:[#allocation4 + $0x3c] sm:$0xf]
    %v792 = vld [vmem:[#allocation4 + $0x40] sm:$0xf]
    %v793 = vld [vmem:[#allocation4 + $0x44] sm:$0xf]
    %v794 = vld [vmem:[#allocation4 + $0x48] sm:$0xf]
    %v795 = vld [vmem:[#allocation4 + $0x4c] sm:$0xf]
    %v796 = vld [vmem:[#allocation4 + $0x50] sm:$0xf]
    %v797 = vld [vmem:[#allocation4 + $0x54] sm:$0xf]
    %v798 = vld [vmem:[#allocation4 + $0x58] sm:$0xf]
    %v799 = vld [vmem:[#allocation4 + $0x5c] sm:$0xf]
    %v800 = vld [vmem:[#allocation4 + $0x60] sm:$0xf]
    %v801 = vld [vmem:[#allocation4 + $0x64] sm:$0xf]
    %v802 = vld [vmem:[#allocation4 + $0x68] sm:$0xf]
    %v803 = vld [vmem:[#allocation4 + $0x6c] sm:$0xf]
    %v804 = vld [vmem:[#allocation4 + $0x70] sm:$0xf]
    %v805 = vld [vmem:[#allocation4 + $0x74] sm:$0xf]
    %v806 = vld [vmem:[#allocation4 + $0x78] sm:$0xf]
    %v807 = vld [vmem:[#allocation4 + $0x7c] sm:$0xf]
    %v808 = vld [vmem:[%s4] sm:$0x1]
    %v810 = vlaneseq
    %v811 = vshrl.u32 %v810, 7
    %v812 = vsub.s32 0, %v811
    %v813 = vrot.slane %v808, %v812
    %v847 = vunpack.c.l.b16 %v776
    %v848 = vunpack.c.l.b16 %v777
    %v849 = vunpack.c.l.b16 %v778
    %v850 = vunpack.c.l.b16 %v779
    %v851 = vunpack.c.l.b16 %v780
    %v852 = vunpack.c.l.b16 %v781
    %v853 = vunpack.c.l.b16 %v782
    %v854 = vunpack.c.l.b16 %v783
    %v855 = vunpack.c.l.b16 %v784
    %v856 = vunpack.c.l.b16 %v785
    %v857 = vunpack.c.l.b16 %v786
    %v858 = vunpack.c.l.b16 %v787
    %v859 = vunpack.c.l.b16 %v788
    %v860 = vunpack.c.l.b16 %v789
    %v861 = vunpack.c.l.b16 %v790
    %v862 = vunpack.c.l.b16 %v791
    %v863 = vunpack.c.l.b16 %v792
    %v864 = vunpack.c.l.b16 %v793
    %v865 = vunpack.c.l.b16 %v794
    %v866 = vunpack.c.l.b16 %v795
    %v867 = vunpack.c.l.b16 %v796
    %v868 = vunpack.c.l.b16 %v797
    %v869 = vunpack.c.l.b16 %v798
    %v870 = vunpack.c.l.b16 %v799
    %v871 = vunpack.c.l.b16 %v800
    %v872 = vunpack.c.l.b16 %v801
    %v873 = vunpack.c.l.b16 %v802
    %v874 = vunpack.c.l.b16 %v803
    %v875 = vunpack.c.l.b16 %v804
    %v876 = vunpack.c.l.b16 %v805
    %v877 = vunpack.c.l.b16 %v806
    %v878 = vunpack.c.l.b16 %v807
    %v879 = vpack.c.b16 %v848, %v847
    %v880 = vpack.c.b16 %v850, %v849
    %v881 = vpack.c.b16 %v852, %v851
    %v882 = vpack.c.b16 %v854, %v853
    %v883 = vpack.c.b16 %v856, %v855
    %v884 = vpack.c.b16 %v858, %v857
    %v885 = vpack.c.b16 %v860, %v859
    %v886 = vpack.c.b16 %v862, %v861
    %v887 = vpack.c.b16 %v864, %v863
    %v888 = vpack.c.b16 %v866, %v865
    %v889 = vpack.c.b16 %v868, %v867
    %v890 = vpack.c.b16 %v870, %v869
    %v891 = vpack.c.b16 %v872, %v871
    %v892 = vpack.c.b16 %v874, %v873
    %v893 = vpack.c.b16 %v876, %v875
    %v894 = vpack.c.b16 %v878, %v877
    %911 = vmatprep.subr.bf16.mxu0 0
    %912 = vmatpush1.bf16.msra.mxu0 %v879
    %913 = vmatprep.subr.bf16.mxu0 0
    %914 = vmatpush1.bf16.msra.mxu0 %v880
    %915 = vmatprep.subr.bf16.mxu0 0
    %916 = vmatpush1.bf16.msra.mxu0 %v881
    %917 = vmatprep.subr.bf16.mxu0 0
    %918 = vmatpush1.bf16.msra.mxu0 %v882
    %919 = vmatprep.subr.bf16.mxu0 0
    %920 = vmatpush1.bf16.msra.mxu0 %v883
    %921 = vmatprep.subr.bf16.mxu0 0
    %922 = vmatpush1.bf16.msra.mxu0 %v884
    %923 = vmatprep.subr.bf16.mxu0 0
    %924 = vmatpush1.bf16.msra.mxu0 %v885
    %925 = vmatprep.subr.bf16.mxu0 0
    %926 = vmatpush1.bf16.msra.mxu0 %v886
    %927 = vmatprep.subr.bf16.mxu0 0
    %928 = vmatpush1.bf16.msra.mxu0 %v887
    %929 = vmatprep.subr.bf16.mxu0 0
    %930 = vmatpush1.bf16.msra.mxu0 %v888
    %931 = vmatprep.subr.bf16.mxu0 0
    %932 = vmatpush1.bf16.msra.mxu0 %v889
    %933 = vmatprep.subr.bf16.mxu0 0
    %934 = vmatpush1.bf16.msra.mxu0 %v890
    %935 = vmatprep.subr.bf16.mxu0 0
    %936 = vmatpush1.bf16.msra.mxu0 %v891
    %937 = vmatprep.subr.bf16.mxu0 0
    %938 = vmatpush1.bf16.msra.mxu0 %v892
    %939 = vmatprep.subr.bf16.mxu0 0
    %940 = vmatpush1.bf16.msra.mxu0 %v893
    %941 = vmatprep.subr.bf16.mxu0 0
    %942 = vmatpush1.bf16.msra.mxu0 %v894
    %943 = vmatprep.mubr.bf16.mxu0 %v775
    %944 = vmatmul.mubr.bf16.gmra.mrb[0].mxu0 %v774
    %v945 = vpop.f32.mrb[0].mxu0
    %v946 = vadd.f32 %v813, %v945
    %v947 = vpop.f32.mrb[0].mxu0
    %v948 = vpop.f32.mrb[0].mxu0
    %v949 = vpop.f32.mrb[0].mxu0
    %950 = vdwg.mxu0
    %951 = vst [vmem:[%s5] sm:$0xff] %v946
    // Predicated region
    $region30: #{emotion_classifier_head.1} parent=1 // pred_check
      _
    $region31: #{emotion_classifier_head.1} parent=1 // pred_check_branch
      %953 = sbr.rel (0) target = $region33
    $region32: #{emotion_classifier_head.1} parent=1 // pred_region
      _
    $region33: #{emotion_classifier_head.1} parent=1 // pred_fallthru
      _
    // Predicated region
    $region34: #{emotion_classifier_head.1} parent=1 // pred_check
      _
    $region35: #{emotion_classifier_head.1} parent=1 // pred_check_branch
      %955 = sbr.rel (0) target = $region37
    $region36: #{emotion_classifier_head.1} parent=1 // pred_region
      _
    $region37: #{emotion_classifier_head.1} parent=1 // pred_fallthru
      _
    %956 = vsyncpa [#allocation3], 1
    %957 = vsyncpa [#allocation5], 1

</llo_original>
